<compile_context>
chip_gen: v5e
topology: v5e:2x2
jax: 0.10.0
libtpu: 0.0.40
codegen_flags: <defaults>
</compile_context>

<pallas_src>
import functools

import jax
import jax.numpy as jnp
from jax.experimental import pallas as pl
from jax.experimental.pallas import tpu as pltpu


# ------------------------------ sizing helpers -------------------------------
def _round_up(x, m):
    return (x + m - 1) // m * m


def _vmem_budget_bytes():
    """Generation-aware VMEM budget (~0.75x physical per-core VMEM)."""
    try:
        cap = int(pltpu.get_tpu_info().vmem_capacity_bytes)
    except Exception:  # no TPU info available -> assume the smallest (v7x, 64 MiB)
        cap = 64 * 1024 * 1024
    return max(32 * 1024 * 1024, int(0.75 * cap))


def _pick_batch_tile(n, f, budget_bytes):
    """Largest multiple-of-8 batch tile whose working set fits the budget.

    Kernel 2 is the binding one: double-buffered (tile, F) input + output
    (16*F bytes/row in f32) plus (F,F) weight buffers; kernel 1 needs strictly
    less. The tile is also capped so the 2-way TensorCore split of the stats
    pass never pads by more than one tile.
    """
    fixed = 2 * f * f * 4 + (1 << 16)     # (F,F) buffers + slack
    per_row = 16 * f                      # 2x in + 2x out rows, f32
    t = max((budget_bytes - fixed) // per_row, 8)
    t = (t // 8) * 8
    return int(max(8, min(t, 2048, _round_up(pl.cdiv(n, 2), 8))))


# ------------------- kernel 1: dual-core batch-tiled stats -------------------
def _stats_kernel(x_ref, shift_ref, sums_ref, m2_ref):
    """Per-core partial sum(x-shift) and (x-shift)^T(x-shift), accumulated
    directly in the VMEM-resident output blocks (P3 accumulator pattern)."""

    @pl.when(pl.program_id(1) == 0)
    def _init():
        sums_ref[...] = jnp.zeros_like(sums_ref)
        m2_ref[...] = jnp.zeros_like(m2_ref)

    z = x_ref[...].astype(jnp.float32) - shift_ref[...]            # (TN, F)
    sums_ref[...] += jnp.sum(z, axis=0, keepdims=True)             # (1, F)
    # Transpose-free MXU form: contraction over the batch dim of both operands
    # (== pl.dot(z, z, trans_a=True)); no XLU vxpose of the (TN, F) tile.
    m2_ref[...] += jax.lax.dot_general(
        z, z,
        dimension_numbers=(((0,), (0,)), ((), ())),
        preferred_element_type=jnp.float32,
    )


def _batch_stats(x_padded, shift, *, tile_n, blocks_per_core, vmem_limit):
    n_pad, f = x_padded.shape
    return pl.pallas_call(
        _stats_kernel,
        out_shape=(
            jax.ShapeDtypeStruct((2, 1, f), jnp.float32),   # per-core sum(x-shift)
            jax.ShapeDtypeStruct((2, f, f), jnp.float32),   # per-core sum z^T z
        ),
        grid=(2, blocks_per_core),
        in_specs=[
            pl.BlockSpec((tile_n, f), lambda c, n: (c * blocks_per_core + n, 0)),
            pl.BlockSpec((1, f), lambda c, n: (0, 0)),
        ],
        out_specs=(
            pl.BlockSpec((None, 1, f), lambda c, n: (c, 0, 0)),
            pl.BlockSpec((None, f, f), lambda c, n: (c, 0, 0)),
        ),
        compiler_params=pltpu.CompilerParams(
            # leading axis shards across TensorCores on v7x; inner axis is the
            # batch reduction (output resident across it).
            dimension_semantics=("parallel", "arbitrary"),
            vmem_limit_bytes=vmem_limit,
        ),
        cost_estimate=pl.CostEstimate(
            flops=int(2 * n_pad * f * f),
            transcendentals=0,
            bytes_accessed=int(4 * (n_pad * f + 2 * f * f + 2 * f)),
        ),
    )(x_padded, shift)


# -------------- kernel 2: fused whitening apply (x @ W + bias) ---------------
def _apply_kernel(x_ref, w_ref, bias_ref, y_ref, *, use_bf16):
    x = x_ref[...]
    w = w_ref[...]
    if use_bf16:
        x = x.astype(jnp.bfloat16)
        w = w.astype(jnp.bfloat16)
    else:
        x = x.astype(jnp.float32)
        w = w.astype(jnp.float32)
    y = jnp.dot(x, w, preferred_element_type=jnp.float32)
    # centering folded into the bias; add stays in f32 (valid on v5e too)
    y_ref[...] = (y + bias_ref[...]).astype(y_ref.dtype)


def _center_and_whiten(x_padded, w_eff, bias, *, tile_n, vmem_limit,
                       use_bf16, buffered_invariants):
    n_pad, f = x_padded.shape

    def inv_spec(shape):
        # Grid-invariant operands are never re-fetched: single-buffer them to
        # free an (F,F) f32 buffer for a bigger batch tile.
        if buffered_invariants:
            return pl.BlockSpec(shape, lambda n: (0, 0),
                                pipeline_mode=pl.Buffered(1))
        return pl.BlockSpec(shape, lambda n: (0, 0))

    return pl.pallas_call(
        functools.partial(_apply_kernel, use_bf16=use_bf16),
        out_shape=jax.ShapeDtypeStruct((n_pad, f), jnp.float32),
        grid=(n_pad // tile_n,),
        in_specs=[
            pl.BlockSpec((tile_n, f), lambda n: (n, 0)),
            inv_spec((f, f)),
            inv_spec((1, f)),
        ],
        out_specs=pl.BlockSpec((tile_n, f), lambda n: (n, 0)),
        compiler_params=pltpu.CompilerParams(
            dimension_semantics=("parallel",),   # independent batch tiles
            vmem_limit_bytes=vmem_limit,
        ),
        cost_estimate=pl.CostEstimate(
            flops=int(2 * n_pad * f * f),
            transcendentals=0,
            bytes_accessed=int(4 * (2 * n_pad * f + f * f + f)),
        ),
    )(x_padded, w_eff, bias)


# ---------------------------------- forward ----------------------------------
def shuffled_dbn_forward(x, num_groups, shuffle_idx, *, eps=1e-5,
                         use_bf16_matmul=False):
    """Port of ShuffledDBN.forward.

    x:           (N, F) float array
    num_groups:  int, must divide F
    shuffle_idx: (F,) int32 permutation (deterministic stand-in for randperm)
    """
    N, F = x.shape
    G = num_groups
    assert F % G == 0, "num_groups must divide num_features"
    D = F // G

    # Lane-density guard: Pallas path requires F % 128 == 0 (unmasked vst);
    # tiny / ragged feature counts fall back to plain XLA.
    use_pallas = (F % 128 == 0)

    if use_pallas:
        budget = _vmem_budget_bytes()
        tile_n = _pick_batch_tile(N, F, budget)
        blocks_per_core = pl.cdiv(N, 2 * tile_n)
        n_pad_total = 2 * tile_n * blocks_per_core
        pad = n_pad_total - N
        x_padded = jnp.pad(x, ((0, pad), (0, 0))) if pad else x

        # Cheap shift (row 0 of x) guards the single-pass Gram against
        # catastrophic cancellation when the data mean >> std.
        shift = x[0:1, :].astype(jnp.float32)                     # (1, F)

        sums_pc, m2_pc = _batch_stats(
            x_padded, shift, tile_n=tile_n,
            blocks_per_core=blocks_per_core, vmem_limit=budget)

        s = jnp.sum(sums_pc, axis=0)                              # (1, F)
        m2 = jnp.sum(m2_pc, axis=0)                               # (F, F)
        if pad:  # zero-padded rows contributed exactly (-shift) / shift^T shift
            s = s + pad * shift
            m2 = m2 - pad * (shift.T @ shift)

        mu_z = s / float(N)                                       # mean of (x - shift)
        mean = shift + mu_z                                       # (1, F) column mean
        gram = m2 - float(N) * (mu_z.T @ mu_z)                    # sum (x-mu)(x-mu)^T
    else:
        xf = x.astype(jnp.float32)
        mean = jnp.mean(xf, axis=0, keepdims=True)
        xc = xf - mean
        gram = xc.T @ xc

    # --- tiny (F x F) wrapper math; no full-activation traffic below ---
    # NOTE: the reference divides the covariance by x.shape[0] == num_groups
    # (not N) after the transpose — kept verbatim to match the original module.
    cov_full = gram / float(G)

    cov_sh = cov_full[shuffle_idx][:, shuffle_idx]                # shuffled order
    g_idx = jnp.arange(G)
    cov_blocks = cov_sh.reshape(G, D, G, D)[g_idx, :, g_idx, :]   # (G, D, D)
    # eps*I keeps rsqrt finite on near-singular groups.
    cov_blocks = cov_blocks + eps * jnp.eye(D, dtype=cov_blocks.dtype)

    # TODO(synk): symeig/eigh stays outside the kernel (no Pallas eigensolver).
    S, U = jnp.linalg.eigh(cov_blocks)                            # (G,D), (G,D,D)
    W_g = jnp.einsum("gij,gj,gkj->gik", U, jax.lax.rsqrt(S), U)

    # Block-diagonal whitening matrix in shuffled order; fold the shuffle /
    # un-shuffle permutations and the centering so the heavy pass is just
    #   out = x @ W_eff + bias,  W_eff[i,j] = W_bd[inv[i], inv[j]],
    #   bias = -(mean @ W_eff).
    W_bd = jnp.zeros((G, D, G, D), jnp.float32)
    W_bd = W_bd.at[g_idx, :, g_idx, :].set(W_g.astype(jnp.float32))
    W_bd = W_bd.reshape(F, F)
    inv_idx = jnp.argsort(shuffle_idx)
    W_eff = W_bd[inv_idx][:, inv_idx]                             # (F, F)
    bias = -(mean @ W_eff)                                        # (1, F)

    if not use_pallas:
        return x.astype(jnp.float32) @ W_eff + bias

    try:
        y = _center_and_whiten(x_padded, W_eff, bias, tile_n=tile_n,
                               vmem_limit=budget, use_bf16=use_bf16_matmul,
                               buffered_invariants=True)
    except Exception:
        # pipeline_mode=pl.Buffered(1) unsupported on this jax build:
        # fall back to default double-buffered invariant operands.
        y = _center_and_whiten(x_padded, W_eff, bias, tile_n=tile_n,
                               vmem_limit=budget, use_bf16=use_bf16_matmul,
                               buffered_invariants=False)
    return y[:N] if pad else y


# ----------------------------- pure-JAX reference ----------------------------
def _reference_forward(x, num_groups, shuffle_idx, *, eps=1e-5):
    N, F = x.shape
    G = num_groups
    D = F // G
    x_sh = x[:, shuffle_idx]
    xg = x_sh.reshape(N, G, D)
    xg = xg - xg.mean(axis=0, keepdims=True)
    xg = jnp.transpose(xg, (1, 0, 2))                    # (G, N, D)
    covs = jnp.einsum("gnd,gne->gde", xg, xg) / G        # reference: / num_groups
    covs = covs + eps * jnp.eye(D, dtype=covs.dtype)
    S, U = jnp.linalg.eigh(covs)
    W = jnp.einsum("gij,gj,gkj->gik", U, jax.lax.rsqrt(S), U)
    y = jnp.einsum("gnd,gde->gne", xg, W)
    y_feat = jnp.transpose(y, (0, 2, 1)).reshape(F, N)
    return y_feat[jnp.argsort(shuffle_idx)].T


# ------------------------------------ main ------------------------------------
if __name__ == "__main__":
    # ShuffledDBN has no learnable parameters; only the per-forward random
    # feature permutation, made deterministic via PRNGKey(0).
    key = jax.random.PRNGKey(0)
    k_x, k_perm, k_x2, k_perm2 = jax.random.split(key, 4)

    # Lane-dense smoke test (F multiple of 128) — exercises both Pallas kernels.
    N, F, G = 256, 128, 4
    x = jax.random.normal(k_x, (N, F), dtype=jnp.float32)
    shuffle_idx = jax.random.permutation(k_perm, F)

    out = shuffled_dbn_forward(x, G, shuffle_idx)
    jax.block_until_ready(out)
    assert out.shape == (N, F) and out.dtype == jnp.float32
    ref = _reference_forward(x, G, shuffle_idx)
    err = float(jnp.max(jnp.abs(out - ref)))
    assert err < 1e-2, f"Pallas path mismatch vs pure-JAX reference: {err}"

    # Tiny, non-lane-dense F exercises the documented XLA fallback path.
    N2, F2, G2 = 32, 16, 4
    x2 = jax.random.normal(k_x2, (N2, F2), dtype=jnp.float32)
    shuffle_idx2 = jax.random.permutation(k_perm2, F2)
    out2 = shuffled_dbn_forward(x2, G2, shuffle_idx2)
    jax.block_until_ready(out2)
    ref2 = _reference_forward(x2, G2, shuffle_idx2)
    err2 = float(jnp.max(jnp.abs(out2 - ref2)))
    assert err2 < 1e-2, f"fallback path mismatch vs pure-JAX reference: {err2}"

    print("KERNEL_OK")
</pallas_src>

<mosaic_0001>
module attributes {stable_mosaic.version = 11 : i64} {
  func.func @_stats_kernel(%arg0: i32, %arg1: i32, %arg2: memref<128x128xf32, #tpu.memory_space<vmem>>, %arg3: memref<1x128xf32, #tpu.memory_space<vmem>>, %arg4: memref<1x1x128xf32, #tpu.memory_space<vmem>>, %arg5: memref<1x128x128xf32, #tpu.memory_space<vmem>>) attributes {dimension_semantics = [#tpu.dimension_semantics<parallel>, #tpu.dimension_semantics<arbitrary>], iteration_bounds = array<i64: 2, 1>, scalar_prefetch = 0 : i64, scratch_operands = 0 : i64, tpu.core_type = #tpu.core_type<tc>, window_params = [{transform_indices = @transform_0, window_bounds = array<i64: 128, 128>}, {pipeline_mode = #tpu.pipeline_mode<synchronous>, transform_indices = @transform_1, window_bounds = array<i64: 1, 128>}, {transform_indices = @transform_2, window_bounds = array<i64: 1, 1, 128>}, {transform_indices = @transform_3, window_bounds = array<i64: 1, 128, 128>}]} {
    %c0_i32 = arith.constant 0 : i32
    %0 = arith.cmpi eq, %arg1, %c0_i32 : i32
    %1 = arith.extui %0 : i1 to i32
    %c0_i32_0 = arith.constant 0 : i32
    %2 = arith.cmpi ne, %1, %c0_i32_0 : i32
    scf.if %2 {
      %cst_17 = arith.constant 0.000000e+00 : f32
      %22 = vector.broadcast %cst_17 : f32 to vector<1x128xf32>
      %c0_18 = arith.constant 0 : index
      %c0_19 = arith.constant 0 : index
      %c0_20 = arith.constant 0 : index
      %23 = vector.load %arg4[%c0_18, %c0_19, %c0_20] : memref<1x1x128xf32, #tpu.memory_space<vmem>>, vector<1x1x128xf32>
      %24 = vector.shape_cast %23 : vector<1x1x128xf32> to vector<1x128xf32>
      %25 = vector.shape_cast %22 : vector<1x128xf32> to vector<1x1x128xf32>
      tpu.vector_store %arg4[%c0_18, %c0_19, %c0_20], %25 {strides = array<i32>} : memref<1x1x128xf32, #tpu.memory_space<vmem>>, vector<1x1x128xf32>,
      %cst_21 = arith.constant 0.000000e+00 : f32
      %26 = vector.broadcast %cst_21 : f32 to vector<128x128xf32>
      %c0_22 = arith.constant 0 : index
      %c0_23 = arith.constant 0 : index
      %c0_24 = arith.constant 0 : index
      %27 = vector.load %arg5[%c0_22, %c0_23, %c0_24] : memref<1x128x128xf32, #tpu.memory_space<vmem>>, vector<1x128x128xf32>
      %28 = vector.shape_cast %27 : vector<1x128x128xf32> to vector<128x128xf32>
      %29 = vector.shape_cast %26 : vector<128x128xf32> to vector<1x128x128xf32>
      tpu.vector_store %arg5[%c0_22, %c0_23, %c0_24], %29 {strides = array<i32>} : memref<1x128x128xf32, #tpu.memory_space<vmem>>, vector<1x128x128xf32>,
    } else {
    }
    %c0 = arith.constant 0 : index
    %c0_1 = arith.constant 0 : index
    %3 = vector.load %arg2[%c0, %c0_1] : memref<128x128xf32, #tpu.memory_space<vmem>>, vector<128x128xf32>
    %c0_2 = arith.constant 0 : index
    %c0_3 = arith.constant 0 : index
    %4 = vector.load %arg3[%c0_2, %c0_3] : memref<1x128xf32, #tpu.memory_space<vmem>>, vector<1x128xf32>
    %5 = vector.broadcast %4 : vector<1x128xf32> to vector<128x128xf32>
    %6 = arith.subf %3, %5 : vector<128x128xf32>
    %c0_4 = arith.constant 0 : index
    %c0_5 = arith.constant 0 : index
    %c0_6 = arith.constant 0 : index
    %7 = vector.load %arg4[%c0_4, %c0_5, %c0_6] : memref<1x1x128xf32, #tpu.memory_space<vmem>>, vector<1x1x128xf32>
    %8 = vector.shape_cast %7 : vector<1x1x128xf32> to vector<1x128xf32>
    %cst = arith.constant dense<0.000000e+00> : vector<128xf32>
    %9 = vector.multi_reduction <add>, %6, %cst [0] : vector<128x128xf32> to vector<128xf32>
    %10 = vector.shape_cast %9 : vector<128xf32> to vector<1x128xf32>
    %11 = arith.addf %8, %10 : vector<1x128xf32>
    %c0_7 = arith.constant 0 : index
    %c0_8 = arith.constant 0 : index
    %c0_9 = arith.constant 0 : index
    %12 = vector.load %arg4[%c0_7, %c0_8, %c0_9] : memref<1x1x128xf32, #tpu.memory_space<vmem>>, vector<1x1x128xf32>
    %13 = vector.shape_cast %12 : vector<1x1x128xf32> to vector<1x128xf32>
    %14 = vector.shape_cast %11 : vector<1x128xf32> to vector<1x1x128xf32>
    tpu.vector_store %arg4[%c0_7, %c0_8, %c0_9], %14 {strides = array<i32>} : memref<1x1x128xf32, #tpu.memory_space<vmem>>, vector<1x1x128xf32>,
    %c0_10 = arith.constant 0 : index
    %c0_11 = arith.constant 0 : index
    %c0_12 = arith.constant 0 : index
    %15 = vector.load %arg5[%c0_10, %c0_11, %c0_12] : memref<1x128x128xf32, #tpu.memory_space<vmem>>, vector<1x128x128xf32>
    %16 = vector.shape_cast %15 : vector<1x128x128xf32> to vector<128x128xf32>
    %cst_13 = arith.constant dense<0.000000e+00> : vector<128x128xf32>
    %17 = tpu.matmul %6, %6, %cst_13 {dimension_numbers = #tpu.dot_dimension_numbers<[0], [0], [1], [1], [0, 1, 1, 1], [], []>} : vector<128x128xf32>, vector<128x128xf32>, vector<128x128xf32> -> vector<128x128xf32>
    %18 = arith.addf %16, %17 : vector<128x128xf32>
    %c0_14 = arith.constant 0 : index
    %c0_15 = arith.constant 0 : index
    %c0_16 = arith.constant 0 : index
    %19 = vector.load %arg5[%c0_14, %c0_15, %c0_16] : memref<1x128x128xf32, #tpu.memory_space<vmem>>, vector<1x128x128xf32>
    %20 = vector.shape_cast %19 : vector<1x128x128xf32> to vector<128x128xf32>
    %21 = vector.shape_cast %18 : vector<128x128xf32> to vector<1x128x128xf32>
    tpu.vector_store %arg5[%c0_14, %c0_15, %c0_16], %21 {strides = array<i32>} : memref<1x128x128xf32, #tpu.memory_space<vmem>>, vector<1x128x128xf32>,
    return
  }
  func.func @transform_0(%arg0: i32, %arg1: i32) -> (i32, i32) {
    %c1_i32 = arith.constant 1 : i32
    %0 = arith.muli %arg0, %c1_i32 : i32
    %1 = arith.addi %0, %arg1 : i32
    %c0_i32 = arith.constant 0 : i32
    %c0_i32_0 = arith.constant 0 : i32
    return %1, %c0_i32 : i32, i32
  }
  func.func @transform_1(%arg0: i32, %arg1: i32) -> (i32, i32) {
    %c0_i32 = arith.constant 0 : i32
    %c0_i32_0 = arith.constant 0 : i32
    %c0_i32_1 = arith.constant 0 : i32
    return %c0_i32, %c0_i32_0 : i32, i32
  }
  func.func @transform_2(%arg0: i32, %arg1: i32) -> (i32, i32, i32) {
    %c0_i32 = arith.constant 0 : i32
    %c0_i32_0 = arith.constant 0 : i32
    %c0_i32_1 = arith.constant 0 : i32
    return %arg0, %c0_i32, %c0_i32_0 : i32, i32, i32
  }
  func.func @transform_3(%arg0: i32, %arg1: i32) -> (i32, i32, i32) {
    %c0_i32 = arith.constant 0 : i32
    %c0_i32_0 = arith.constant 0 : i32
    %c0_i32_1 = arith.constant 0 : i32
    return %arg0, %c0_i32, %c0_i32_0 : i32, i32, i32
  }
}

</mosaic_0001>

<llo_original>
// kernel: tpu_custom_call.1
$region0: #{tpu_custom_call.1}
  #allocation0 [shape = 'u32[]', space=smem, size = 0x4, offset = 0x4, fixed_abs, tag = 'smem constant byte address 0x4 - core index']
  #allocation1 [shape = 'u32[72,128]{1,0:T(1,128)}', space=vmem, size = 0x9000, scoped, tag = 'internal scratch']
  %s0 = inlined_call_operand.hbm [shape: f32[256,128], index: 0, kind: input, shape index: {}]
  %s1 = inlined_call_operand.hbm [shape: f32[1,128], index: 1, kind: input, shape index: {}]
  %s2 = inlined_call_operand.hbm [shape: f32[2,1,128], index: 2, kind: output, shape index: {0}]
  %s3 = inlined_call_operand.hbm [shape: f32[2,128,128], index: 3, kind: output, shape index: {1}]
  %4 = xla_tuple %s2, %s3
  %s5 = sld [smem:[#allocation0]]
  $region61: #{tpu_custom_call.1} parent=0
    _
  %s7 = ssub.s32 1, %s5
  %s8 = scalar_select 0, %s7, %s5
  $region1: #{tpu_custom_call.1} parent=0
    #allocation2 [shape = 'u8[131072]{0}', space=vmem, size = 0x20000, scoped, tag = 'input window, operand 0']
    #allocation3 [shape = 's32[2]{0}', space=sflag, size = 0x8, scoped, tag = 'scoped memory for tpu_custom_call.1']
    #allocation4 [shape = 's32[2]{0}', space=sflag, size = 0x8, scoped, tag = 'scoped memory for tpu_custom_call.1']
    #allocation5 [shape = 'u8[512]{0}', space=vmem, size = 0x400, scoped, tag = 'input window, operand 1, single buffered']
    #allocation6 [shape = 's32[1]{0}', space=sflag, size = 0x4, scoped, tag = 'scoped memory for tpu_custom_call.1']
    #allocation7 [shape = 'u8[1024]{0}', space=vmem, size = 0x400, scoped, tag = 'output window, operand 0']
    #allocation8 [shape = 'u8[131072]{0}', space=vmem, size = 0x20000, scoped, tag = 'output window, operand 1']
    #allocation9 [shape = 's32[2]{0}', space=sflag, size = 0x8, scoped, tag = 'scoped memory for tpu_custom_call.1']
    %9 = vsyncpa [#allocation3], 0
    %s10 = scalar_lea.sflag [#allocation3], 1
    %11 = vsyncpa %s10, 0
    %12 = vsyncpa [#allocation6], 0
    %13 = vsyncpa [#allocation4], 0
    %s14 = scalar_lea.sflag [#allocation4], 1
    %15 = vsyncpa %s14, 0
    %16 = vsyncpa [#allocation9], 0
    %s17 = scalar_lea.sflag [#allocation9], 1
    %18 = vsyncpa %s17, 0
    loop: start=0, step=1, limit=4
    $region2: #{tpu_custom_call.1} parent=1 // loop_pre_header
      _
    $region3: #{tpu_custom_call.1} parent=1 // loop_header
      %s20 = sphi 0, %s24
      %p21 = scmp.ge.s32.totalorder %s20, 4
      %s27 = sphi 0, %s39
      %s28 = sphi 0, %s35
      %s29 = sphi 0, %s27
      %s30 = sphi 0, %s28
      %s31 = sphi 0, %s29
      %s32 = sphi 0, %s30
      %s44 = sphi 0, %s46
      %s47 = sphi 0, %s44
      %s48 = sphi 0, %s47
      %s64 = sphi 0, %s48
      %s68 = sphi 0, %s68
      %s70 = sphi 0, %s68
      %s71 = sphi 0, %s70
      %s85 = sphi 0, %s71
      %s91 = sphi 0, %s93
      %s94 = sphi 0, %s91
      %s95 = sphi 0, %s94
      %s111 = sphi 0, %s95
      %s117 = sphi 0, %s119
      %s120 = sphi 0, %s117
      %s121 = sphi 0, %s120
      %s137 = sphi 0, %s121
    $region4: #{tpu_custom_call.1} parent=1 // loop_header_branch
      %23 = sbr.rel (%p21) target = $region8
    $region5: #{tpu_custom_call.1} parent=1 // loop_body
      %s25 = ssub.s32 %s20, 1
      %s26 = ssub.s32 %s20, 2
      %s33 = sadd.s32 1, %s28
      %p34 = scmp.ge.s32.totalorder %s33, 1
      %s35 = scalar_select %p34, 0, %s33
      %s36 = sadd.s32 1, %s27
      %s37 = scalar_select %p34, %s36, %s27
      %p38 = scmp.ge.s32.totalorder %s37, 2
      %s39 = scalar_select %p38, 0, %s37
      %s40 = sadd.s32 %s27, %s28
      %s41 = sadd.s32 %s39, %s35
      %s42 = ssub.s32 %s40, %s41
      %p43 = scmp.eq.s32.totalorder %s42, 0
      %s45 = sadd.s32 %s44, 1
      %s46 = scalar_select %p43, %s44, %s45
      %p49 = pneg %p43
      %p50 = scmp.eq.s32.totalorder %s20, 1
      %p51 = por %p49, %p50
      %p52 = scmp.ne.s32.totalorder %s44, %s47
      %p53 = scmp.eq.s32.totalorder %s20, 0
      %p54 = por %p52, %p53
      %p55 = scmp.ne.s32.totalorder %s44, %s47
      %p56 = scmp.eq.s32.totalorder %s25, 1
      %p57 = por %p55, %p56
      %p58 = scmp.ne.s32.totalorder %s47, %s48
      %p59 = scmp.eq.s32.totalorder %s25, 0
      %p60 = por %p58, %p59
      %p61 = scmp.ne.s32.totalorder %s47, %s48
      %p62 = scmp.eq.s32.totalorder %s26, 1
      %p63 = por %p61, %p62
      %p65 = scmp.ne.s32.totalorder %s48, %s64
      %p66 = scmp.eq.s32.totalorder %s26, 0
      %p67 = por %p65, %p66
      %s69 = sadd.s32 %s68, 1
      %p72 = scmp.eq.s32.totalorder %s20, 1
      %p73 = scmp.ne.s32.totalorder %s68, %s70
      %p74 = scmp.eq.s32.totalorder %s20, 0
      %p75 = por %p73, %p74
      %p76 = scmp.ne.s32.totalorder %s68, %s70
      %p77 = scmp.eq.s32.totalorder %s25, 1
      %p78 = por %p76, %p77
      %p79 = scmp.ne.s32.totalorder %s70, %s71
      %p80 = scmp.eq.s32.totalorder %s25, 0
      %p81 = por %p79, %p80
      %p82 = scmp.ne.s32.totalorder %s70, %s71
      %p83 = scmp.eq.s32.totalorder %s26, 1
      %p84 = por %p82, %p83
      %p86 = scmp.ne.s32.totalorder %s71, %s85
      %p87 = scmp.eq.s32.totalorder %s26, 0
      %p88 = por %p86, %p87
      %s89 = ssub.s32 %s27, %s39
      %p90 = scmp.eq.s32.totalorder %s89, 0
      %s92 = sadd.s32 %s91, 1
      %s93 = scalar_select %p90, %s91, %s92
      %p96 = pneg %p90
      %p97 = scmp.eq.s32.totalorder %s20, 1
      %p98 = por %p96, %p97
      %p99 = scmp.ne.s32.totalorder %s91, %s94
      %p100 = scmp.eq.s32.totalorder %s20, 0
      %p101 = por %p99, %p100
      %p102 = scmp.ne.s32.totalorder %s91, %s94
      %p103 = scmp.eq.s32.totalorder %s25, 1
      %p104 = por %p102, %p103
      %p105 = scmp.ne.s32.totalorder %s94, %s95
      %p106 = scmp.eq.s32.totalorder %s25, 0
      %p107 = por %p105, %p106
      %p108 = scmp.ne.s32.totalorder %s94, %s95
      %p109 = scmp.eq.s32.totalorder %s26, 1
      %p110 = por %p108, %p109
      %p112 = scmp.ne.s32.totalorder %s95, %s111
      %p113 = scmp.eq.s32.totalorder %s26, 0
      %p114 = por %p112, %p113
      %s115 = ssub.s32 %s27, %s39
      %p116 = scmp.eq.s32.totalorder %s115, 0
      %s118 = sadd.s32 %s117, 1
      %s119 = scalar_select %p116, %s117, %s118
      %p122 = pneg %p116
      %p123 = scmp.eq.s32.totalorder %s20, 1
      %p124 = por %p122, %p123
      %p125 = scmp.ne.s32.totalorder %s117, %s120
      %p126 = scmp.eq.s32.totalorder %s20, 0
      %p127 = por %p125, %p126
      %p128 = scmp.ne.s32.totalorder %s117, %s120
      %p129 = scmp.eq.s32.totalorder %s25, 1
      %p130 = por %p128, %p129
      %p131 = scmp.ne.s32.totalorder %s120, %s121
      %p132 = scmp.eq.s32.totalorder %s25, 0
      %p133 = por %p131, %p132
      %p134 = scmp.ne.s32.totalorder %s120, %s121
      %p135 = scmp.eq.s32.totalorder %s26, 1
      %p136 = por %p134, %p135
      %p138 = scmp.ne.s32.totalorder %s121, %s137
      %p139 = scmp.eq.s32.totalorder %s26, 0
      %p140 = por %p138, %p139
      %p141 = scmp.le.s32.totalorder 1, %s20
      %p142 = scmp.lt.s32.totalorder %s20, 3
      %p143 = pnand %p141, %p142
      %p144 = pneg %p143
      // Predicated region
      $region9: #{tpu_custom_call.1} parent=5 // pred_check
        _
      $region10: #{tpu_custom_call.1} parent=5 // pred_check_branch
        %146 = sbr.rel (%p143) target = $region12
      $region11: #{tpu_custom_call.1} parent=5 // pred_region
        %s147 = ssub.s32 %s20, 1
        // Predicated region
        $region13: #{tpu_custom_call.1} parent=11 // pred_check
          %p148 = pneg %p81
        $region14: #{tpu_custom_call.1} parent=11 // pred_check_branch
          %150 = sbr.rel (%p148) target = $region16
        $region15: #{tpu_custom_call.1} parent=11 // pred_region
          %152 = vsyncadd [#allocation6], 0
          %s154 = sshll.u32 %s1, 4
          %s155 = int_to_ptr.hbm [resolvable:$true] %s154
          %s156 = sshll.u32 [#allocation5], 4
          %s157 = int_to_ptr.vmem [resolvable:$true] %s156
          %159 = dma.hbm_to_vmem [thread:$0]  %s155, 16, %s157, [#allocation6]
        $region16: #{tpu_custom_call.1} parent=11 // pred_fallthru
          _
      $region12: #{tpu_custom_call.1} parent=5 // pred_fallthru
        _
      %p160 = scmp.lt.s32.totalorder %s20, 2
      // Predicated region
      $region17: #{tpu_custom_call.1} parent=5 // pred_check
        %p161 = pneg %p160
      $region18: #{tpu_custom_call.1} parent=5 // pred_check_branch
        %163 = sbr.rel (%p161) target = $region20
      $region19: #{tpu_custom_call.1} parent=5 // pred_region
        // Predicated region
        $region21: #{tpu_custom_call.1} parent=19 // pred_check
          %p164 = pneg %p54
        $region22: #{tpu_custom_call.1} parent=19 // pred_check_branch
          %166 = sbr.rel (%p164) target = $region24
        $region23: #{tpu_custom_call.1} parent=19 // pred_region
          %s167 = sand.u32 %s44, 1
          %s168 = scalar_lea.sflag [#allocation3], %s167
          %s169 = sand.u32 %s44, 1
          %s170 = smul.addr %s169, 128
          %s171 = scalar_lea.vmem [#allocation2], %s170
          %s172 = sadd.s32 %s27, %s28
          %s173 = smul.u32 16, %s172
          %175 = vsyncadd %s168, 0
          %s176 = smul.addr %s173, 8
          %s177 = scalar_lea.hbm %s0, %s176
          %s178 = sshll.u32 %s177, 4
          %s179 = int_to_ptr.hbm [resolvable:$true] %s178
          %s180 = sshll.u32 %s171, 4
          %s181 = int_to_ptr.vmem [resolvable:$true] %s180
          %186 = dma.hbm_to_vmem [thread:$0]  %s179, 2048, %s181, %s168, 128, 128, 8
        $region24: #{tpu_custom_call.1} parent=19 // pred_fallthru
          _
      $region20: #{tpu_custom_call.1} parent=5 // pred_fallthru
        _
      %p187 = scmp.le.s32.totalorder 1, %s20
      %p188 = scmp.lt.s32.totalorder %s20, 3
      %p189 = pnand %p187, %p188
      %p190 = pneg %p189
      // Predicated region
      $region25: #{tpu_custom_call.1} parent=5 // pred_check
        _
      $region26: #{tpu_custom_call.1} parent=5 // pred_check_branch
        %192 = sbr.rel (%p189) target = $region28
      $region27: #{tpu_custom_call.1} parent=5 // pred_region
        %s193 = ssub.s32 %s20, 1
        %s194 = sand.u32 %s47, 1
        %s195 = scalar_lea.sflag [#allocation3], %s194
        %s196 = sand.u32 %s47, 1
        %s197 = smul.addr %s196, 128
        %s198 = scalar_lea.vmem [#allocation2], %s197
        // Predicated region
        $region29: #{tpu_custom_call.1} parent=27 // pred_check
          %p199 = pneg %p60
        $region30: #{tpu_custom_call.1} parent=27 // pred_check_branch
          %201 = sbr.rel (%p199) target = $region32
        $region31: #{tpu_custom_call.1} parent=27 // pred_region
          %203 = dma.done %s195, 2048
        $region32: #{tpu_custom_call.1} parent=27 // pred_fallthru
          _
        // Predicated region
        $region33: #{tpu_custom_call.1} parent=27 // pred_check
          %p204 = pneg %p81
        $region34: #{tpu_custom_call.1} parent=27 // pred_check_branch
          %206 = sbr.rel (%p204) target = $region36
        $region35: #{tpu_custom_call.1} parent=27 // pred_region
          %208 = dma.done [#allocation6], 16
        $region36: #{tpu_custom_call.1} parent=27 // pred_fallthru
          _
        %s209 = sand.u32 %s47, 1
        %s210 = scalar_lea.sflag [#allocation3], %s209
        %s211 = sand.u32 %s47, 1
        %s212 = smul.addr %s211, 128
        %s213 = scalar_lea.vmem [#allocation2], %s212
        %p214 = pneg %p60
        %p215 = pneg %p57
        %p216 = pneg %p81
        %p217 = pneg %p78
        %p218 = pneg %p107
        %p219 = pneg %p104
        %s220 = sand.u32 %s94, 1
        %s221 = scalar_lea.sflag [#allocation4], %s220
        %s222 = sand.u32 %s94, 1
        %s223 = scalar_lea.vmem [#allocation7], %s222
        %p224 = pneg %p133
        %p225 = pneg %p130
        %s226 = sand.u32 %s120, 1
        %s227 = scalar_lea.sflag [#allocation9], %s226
        %s228 = sand.u32 %s120, 1
        %s229 = smul.addr %s228, 128
        %s230 = scalar_lea.vmem [#allocation8], %s229
        %s231 = sadd.s32 %s29, %s30
        %s232 = smul.u32 16, %s231
        %p233 = scmp.eq.s32.totalorder %s30, 0
        // Predicated region
        $region37: #{tpu_custom_call.1} parent=27 // pred_check
          %p234 = pneg %p233
        $region38: #{tpu_custom_call.1} parent=27 // pred_check_branch
          %236 = sbr.rel (%p234) target = $region40
        $region39: #{tpu_custom_call.1} parent=27 // pred_region
          %237 = vst [vmem:[%s223] sm:$0x1] 0.0
          %238 = vst [vmem:[%s230] sm:$0xff] 0.0
          %239 = vst [vmem:[%s230 + $0x8] sm:$0xff] 0.0
          %240 = vst [vmem:[%s230 + $0x10] sm:$0xff] 0.0
          %241 = vst [vmem:[%s230 + $0x18] sm:$0xff] 0.0
          %242 = vst [vmem:[%s230 + $0x20] sm:$0xff] 0.0
          %243 = vst [vmem:[%s230 + $0x28] sm:$0xff] 0.0
          %244 = vst [vmem:[%s230 + $0x30] sm:$0xff] 0.0
          %245 = vst [vmem:[%s230 + $0x38] sm:$0xff] 0.0
          %246 = vst [vmem:[%s230 + $0x40] sm:$0xff] 0.0
          %247 = vst [vmem:[%s230 + $0x48] sm:$0xff] 0.0
          %248 = vst [vmem:[%s230 + $0x50] sm:$0xff] 0.0
          %249 = vst [vmem:[%s230 + $0x58] sm:$0xff] 0.0
          %250 = vst [vmem:[%s230 + $0x60] sm:$0xff] 0.0
          %251 = vst [vmem:[%s230 + $0x68] sm:$0xff] 0.0
          %252 = vst [vmem:[%s230 + $0x70] sm:$0xff] 0.0
          %253 = vst [vmem:[%s230 + $0x78] sm:$0xff] 0.0
        $region40: #{tpu_custom_call.1} parent=27 // pred_fallthru
          _
        %v254 = vld [vmem:[%s198] sm:$0xff]
        %v255 = vld [vmem:[%s198 + $0x8] sm:$0xff]
        %v256 = vld [vmem:[%s198 + $0x10] sm:$0xff]
        %v257 = vld [vmem:[%s198 + $0x18] sm:$0xff]
        %v258 = vld [vmem:[%s198 + $0x20] sm:$0xff]
        %v259 = vld [vmem:[%s198 + $0x28] sm:$0xff]
        %v260 = vld [vmem:[%s198 + $0x30] sm:$0xff]
        %v261 = vld [vmem:[%s198 + $0x38] sm:$0xff]
        %v262 = vld [vmem:[%s198 + $0x40] sm:$0xff]
        %v263 = vld [vmem:[%s198 + $0x48] sm:$0xff]
        %v264 = vld [vmem:[%s198 + $0x50] sm:$0xff]
        %v265 = vld [vmem:[%s198 + $0x58] sm:$0xff]
        %v266 = vld [vmem:[%s198 + $0x60] sm:$0xff]
        %v267 = vld [vmem:[%s198 + $0x68] sm:$0xff]
        %v268 = vld [vmem:[%s198 + $0x70] sm:$0xff]
        %v269 = vld [vmem:[%s198 + $0x78] sm:$0xff]
        %v270 = vld [vmem:[#allocation5] sm:$0x1]
        %v272 = vperm.slane %v270, 0
        %v274 = vsub.f32 %v254, %v272
        %v275 = vsub.f32 %v255, %v272
        %v276 = vsub.f32 %v256, %v272
        %v277 = vsub.f32 %v257, %v272
        %v278 = vsub.f32 %v258, %v272
        %v279 = vsub.f32 %v259, %v272
        %v280 = vsub.f32 %v260, %v272
        %v281 = vsub.f32 %v261, %v272
        %v282 = vsub.f32 %v262, %v272
        %v283 = vsub.f32 %v263, %v272
        %v284 = vsub.f32 %v264, %v272
        %v285 = vsub.f32 %v265, %v272
        %v286 = vsub.f32 %v266, %v272
        %v287 = vsub.f32 %v267, %v272
        %v288 = vsub.f32 %v268, %v272
        %v289 = vsub.f32 %v269, %v272
        %v290 = vld [vmem:[%s223] sm:$0x1]
        %v291 = vadd.f32 %v274, %v275
        %v292 = vadd.f32 %v291, %v276
        %v293 = vadd.f32 %v292, %v277
        %v294 = vadd.f32 %v293, %v278
        %v295 = vadd.f32 %v294, %v279
        %v296 = vadd.f32 %v295, %v280
        %v297 = vadd.f32 %v296, %v281
        %v298 = vadd.f32 %v297, %v282
        %v299 = vadd.f32 %v298, %v283
        %v300 = vadd.f32 %v299, %v284
        %v301 = vadd.f32 %v300, %v285
        %v302 = vadd.f32 %v301, %v286
        %v303 = vadd.f32 %v302, %v287
        %v304 = vadd.f32 %v303, %v288
        %v305 = vadd.f32 %v304, %v289
        %v306 = vrot.slane %v305, 4
        %v307 = vadd.f32 %v305, %v306
        %v308 = vrot.slane %v307, 2
        %v309 = vadd.f32 %v307, %v308
        %v310 = vrot.slane %v309, 1
        %v311 = vadd.f32 %v309, %v310
        %v312 = vadd.f32 %v290, %v311
        %313 = vst [vmem:[%s223] sm:$0x1] %v312
        %v314 = vld [vmem:[%s230] sm:$0xff]
        %v315 = vld [vmem:[%s230 + $0x8] sm:$0xff]
        %v316 = vld [vmem:[%s230 + $0x10] sm:$0xff]
        %v317 = vld [vmem:[%s230 + $0x18] sm:$0xff]
        %v318 = vld [vmem:[%s230 + $0x20] sm:$0xff]
        %v319 = vld [vmem:[%s230 + $0x28] sm:$0xff]
        %v320 = vld [vmem:[%s230 + $0x30] sm:$0xff]
        %v321 = vld [vmem:[%s230 + $0x38] sm:$0xff]
        %v322 = vld [vmem:[%s230 + $0x40] sm:$0xff]
        %v323 = vld [vmem:[%s230 + $0x48] sm:$0xff]
        %v324 = vld [vmem:[%s230 + $0x50] sm:$0xff]
        %v325 = vld [vmem:[%s230 + $0x58] sm:$0xff]
        %v326 = vld [vmem:[%s230 + $0x60] sm:$0xff]
        %v327 = vld [vmem:[%s230 + $0x68] sm:$0xff]
        %v328 = vld [vmem:[%s230 + $0x70] sm:$0xff]
        %v329 = vld [vmem:[%s230 + $0x78] sm:$0xff]
        %330 = vxpose.xlu0.b32.start [1/16] %v274, 128
        %331 = vxpose.xlu0.b32.cont [2/16] %v275, 128
        %332 = vxpose.xlu0.b32.cont [3/16] %v276, 128
        %333 = vxpose.xlu0.b32.cont [4/16] %v277, 128
        %334 = vxpose.xlu0.b32.cont [5/16] %v278, 128
        %335 = vxpose.xlu0.b32.cont [6/16] %v279, 128
        %336 = vxpose.xlu0.b32.cont [7/16] %v280, 128
        %337 = vxpose.xlu0.b32.cont [8/16] %v281, 128
        %338 = vxpose.xlu0.b32.cont [9/16] %v282, 128
        %339 = vxpose.xlu0.b32.cont [10/16] %v283, 128
        %340 = vxpose.xlu0.b32.cont [11/16] %v284, 128
        %341 = vxpose.xlu0.b32.cont [12/16] %v285, 128
        %342 = vxpose.xlu0.b32.cont [13/16] %v286, 128
        %343 = vxpose.xlu0.b32.cont [14/16] %v287, 128
        %344 = vxpose.xlu0.b32.cont [15/16] %v288, 128
        %345 = vxpose.xlu0.b32.end [16/16] %v289, 128
        %v346 = vpop.trf.xlu0
        %v347 = vpop.trf.xlu0
        %v348 = vpop.trf.xlu0
        %v349 = vpop.trf.xlu0
        %v350 = vpop.trf.xlu0
        %v351 = vpop.trf.xlu0
        %v352 = vpop.trf.xlu0
        %v353 = vpop.trf.xlu0
        %v354 = vpop.trf.xlu0
        %v355 = vpop.trf.xlu0
        %v356 = vpop.trf.xlu0
        %v357 = vpop.trf.xlu0
        %v358 = vpop.trf.xlu0
        %v359 = vpop.trf.xlu0
        %v360 = vpop.trf.xlu0
        %v361 = vpop.trf.xlu0
        %362 = vmatpush.msra.mxu0 %v289
        %363 = vmatpush.msra.mxu0 %v288
        %364 = vmatpush.msra.mxu0 %v287
        %365 = vmatpush.msra.mxu0 %v286
        %366 = vmatpush.msra.mxu0 %v285
        %367 = vmatpush.msra.mxu0 %v284
        %368 = vmatpush.msra.mxu0 %v283
        %369 = vmatpush.msra.mxu0 %v282
        %370 = vmatpush.msra.mxu0 %v281
        %371 = vmatpush.msra.mxu0 %v280
        %372 = vmatpush.msra.mxu0 %v279
        %373 = vmatpush.msra.mxu0 %v278
        %374 = vmatpush.msra.mxu0 %v277
        %375 = vmatpush.msra.mxu0 %v276
        %376 = vmatpush.msra.mxu0 %v275
        %377 = vmatpush.msra.mxu0 %v274
        %378 = vmatmul.f32.gmra.mxu0 %v346
        %v379 = vpop.f32.mrf.mxu0
        %v380 = vadd.f32 0.0, %v379
        %381 = vmatmul.f32.gmra.mxu0 %v347
        %v382 = vpop.f32.mrf.mxu0
        %v383 = vadd.f32 0.0, %v382
        %384 = vmatmul.f32.gmra.mxu0 %v348
        %v385 = vpop.f32.mrf.mxu0
        %v386 = vadd.f32 0.0, %v385
        %387 = vmatmul.f32.gmra.mxu0 %v349
        %v388 = vpop.f32.mrf.mxu0
        %v389 = vadd.f32 0.0, %v388
        %390 = vmatmul.f32.gmra.mxu0 %v350
        %v391 = vpop.f32.mrf.mxu0
        %v392 = vadd.f32 0.0, %v391
        %393 = vmatmul.f32.gmra.mxu0 %v351
        %v394 = vpop.f32.mrf.mxu0
        %v395 = vadd.f32 0.0, %v394
        %396 = vmatmul.f32.gmra.mxu0 %v352
        %v397 = vpop.f32.mrf.mxu0
        %v398 = vadd.f32 0.0, %v397
        %399 = vmatmul.f32.gmra.mxu0 %v353
        %v400 = vpop.f32.mrf.mxu0
        %v401 = vadd.f32 0.0, %v400
        %402 = vmatmul.f32.gmra.mxu0 %v354
        %v403 = vpop.f32.mrf.mxu0
        %v404 = vadd.f32 0.0, %v403
        %405 = vmatmul.f32.gmra.mxu0 %v355
        %v406 = vpop.f32.mrf.mxu0
        %v407 = vadd.f32 0.0, %v406
        %408 = vmatmul.f32.gmra.mxu0 %v356
        %v409 = vpop.f32.mrf.mxu0
        %v410 = vadd.f32 0.0, %v409
        %411 = vmatmul.f32.gmra.mxu0 %v357
        %v412 = vpop.f32.mrf.mxu0
        %v413 = vadd.f32 0.0, %v412
        %414 = vmatmul.f32.gmra.mxu0 %v358
        %v415 = vpop.f32.mrf.mxu0
        %v416 = vadd.f32 0.0, %v415
        %417 = vmatmul.f32.gmra.mxu0 %v359
        %v418 = vpop.f32.mrf.mxu0
        %v419 = vadd.f32 0.0, %v418
        %420 = vmatmul.f32.gmra.mxu0 %v360
        %v421 = vpop.f32.mrf.mxu0
        %v422 = vadd.f32 0.0, %v421
        %423 = vmatmul.f32.gmra.mxu0 %v361
        %v424 = vpop.f32.mrf.mxu0
        %v425 = vadd.f32 0.0, %v424
        %426 = vdwg.mxu0
        %v427 = vadd.f32 %v314, %v380
        %v428 = vadd.f32 %v315, %v383
        %v429 = vadd.f32 %v316, %v386
        %v430 = vadd.f32 %v317, %v389
        %v431 = vadd.f32 %v318, %v392
        %v432 = vadd.f32 %v319, %v395
        %v433 = vadd.f32 %v320, %v398
        %v434 = vadd.f32 %v321, %v401
        %v435 = vadd.f32 %v322, %v404
        %v436 = vadd.f32 %v323, %v407
        %v437 = vadd.f32 %v324, %v410
        %v438 = vadd.f32 %v325, %v413
        %v439 = vadd.f32 %v326, %v416
        %v440 = vadd.f32 %v327, %v419
        %v441 = vadd.f32 %v328, %v422
        %v442 = vadd.f32 %v329, %v425
        %443 = vst [vmem:[%s230] sm:$0xff] %v427
        %444 = vst [vmem:[%s230 + $0x8] sm:$0xff] %v428
        %445 = vst [vmem:[%s230 + $0x10] sm:$0xff] %v429
        %446 = vst [vmem:[%s230 + $0x18] sm:$0xff] %v430
        %447 = vst [vmem:[%s230 + $0x20] sm:$0xff] %v431
        %448 = vst [vmem:[%s230 + $0x28] sm:$0xff] %v432
        %449 = vst [vmem:[%s230 + $0x30] sm:$0xff] %v433
        %450 = vst [vmem:[%s230 + $0x38] sm:$0xff] %v434
        %451 = vst [vmem:[%s230 + $0x40] sm:$0xff] %v435
        %452 = vst [vmem:[%s230 + $0x48] sm:$0xff] %v436
        %453 = vst [vmem:[%s230 + $0x50] sm:$0xff] %v437
        %454 = vst [vmem:[%s230 + $0x58] sm:$0xff] %v438
        %455 = vst [vmem:[%s230 + $0x60] sm:$0xff] %v439
        %456 = vst [vmem:[%s230 + $0x68] sm:$0xff] %v440
        %457 = vst [vmem:[%s230 + $0x70] sm:$0xff] %v441
        %458 = vst [vmem:[%s230 + $0x78] sm:$0xff] %v442
        %s459 = sand.u32 %s94, 1
        %s460 = scalar_lea.sflag [#allocation4], %s459
        %s461 = sand.u32 %s94, 1
        %s462 = scalar_lea.vmem [#allocation7], %s461
        %s463 = sand.u32 %s120, 1
        %s464 = scalar_lea.sflag [#allocation9], %s463
        %s465 = sand.u32 %s120, 1
        %s466 = smul.addr %s465, 128
        %s467 = scalar_lea.vmem [#allocation8], %s466
        // Predicated region
        $region41: #{tpu_custom_call.1} parent=27 // pred_check
          %p468 = pneg %p104
        $region42: #{tpu_custom_call.1} parent=27 // pred_check_branch
          %470 = sbr.rel (%p468) target = $region44
        $region43: #{tpu_custom_call.1} parent=27 // pred_region
          %472 = vsyncadd %s460, 0
          %s473 = scalar_lea.hbm %s2, %s29
          %s475 = sshll.u32 %s462, 4
          %s476 = int_to_ptr.vmem [resolvable:$true] %s475
          %s477 = sshll.u32 %s473, 4
          %s478 = int_to_ptr.hbm [resolvable:$true] %s477
          %480 = dma.vmem_to_hbm [thread:$0]  %s476, 16, %s478, %s460
        $region44: #{tpu_custom_call.1} parent=27 // pred_fallthru
          _
        // Predicated region
        $region45: #{tpu_custom_call.1} parent=27 // pred_check
          %p481 = pneg %p130
        $region46: #{tpu_custom_call.1} parent=27 // pred_check_branch
          %483 = sbr.rel (%p481) target = $region48
        $region47: #{tpu_custom_call.1} parent=27 // pred_region
          %485 = vsyncadd %s464, 0
          %s486 = smul.addr %s29, 16
          %s487 = smul.addr %s486, 8
          %s488 = scalar_lea.hbm %s3, %s487
          %s489 = sshll.u32 %s467, 4
          %s490 = int_to_ptr.vmem [resolvable:$true] %s489
          %s491 = sshll.u32 %s488, 4
          %s492 = int_to_ptr.hbm [resolvable:$true] %s491
          %497 = dma.vmem_to_hbm [thread:$0]  %s490, 2048, %s492, %s464, 128, 128, 8
        $region48: #{tpu_custom_call.1} parent=27 // pred_fallthru
          _
      $region28: #{tpu_custom_call.1} parent=5 // pred_fallthru
        _
      %p498 = scmp.le.s32.totalorder 2, %s20
      // Predicated region
      $region49: #{tpu_custom_call.1} parent=5 // pred_check
        %p499 = pneg %p498
      $region50: #{tpu_custom_call.1} parent=5 // pred_check_branch
        %501 = sbr.rel (%p499) target = $region52
      $region51: #{tpu_custom_call.1} parent=5 // pred_region
        %s502 = ssub.s32 %s20, 2
        // Predicated region
        $region53: #{tpu_custom_call.1} parent=51 // pred_check
          %p503 = pneg %p110
        $region54: #{tpu_custom_call.1} parent=51 // pred_check_branch
          %505 = sbr.rel (%p503) target = $region56
        $region55: #{tpu_custom_call.1} parent=51 // pred_region
          %s506 = sand.u32 %s95, 1
          %s507 = scalar_lea.sflag [#allocation4], %s506
          %s508 = sand.u32 %s95, 1
          %s509 = scalar_lea.vmem [#allocation7], %s508
          %511 = dma.done %s507, 16
        $region56: #{tpu_custom_call.1} parent=51 // pred_fallthru
          _
        // Predicated region
        $region57: #{tpu_custom_call.1} parent=51 // pred_check
          %p512 = pneg %p136
        $region58: #{tpu_custom_call.1} parent=51 // pred_check_branch
          %514 = sbr.rel (%p512) target = $region60
        $region59: #{tpu_custom_call.1} parent=51 // pred_region
          %s515 = sand.u32 %s121, 1
          %s516 = scalar_lea.sflag [#allocation9], %s515
          %s517 = sand.u32 %s121, 1
          %s518 = smul.addr %s517, 128
          %s519 = scalar_lea.vmem [#allocation8], %s518
          %521 = dma.done %s516, 2048
        $region60: #{tpu_custom_call.1} parent=51 // pred_fallthru
          _
      $region52: #{tpu_custom_call.1} parent=5 // pred_fallthru
        _
    $region6: #{tpu_custom_call.1} parent=1 // loop_footer
      %s24 = sadd.s32 1, %s20
    $region7: #{tpu_custom_call.1} parent=1 // loop_footer_branch
      %19 = sbr.rel target = $region3
    $region8: #{tpu_custom_call.1} parent=1 // loop_exit
      _
    %522 = vsyncpa [#allocation3], 1
    %s523 = scalar_lea.sflag [#allocation3], 1
    %524 = vsyncpa %s523, 1
    %525 = vsyncpa [#allocation6], 1
    %526 = vsyncpa [#allocation4], 1
    %s527 = scalar_lea.sflag [#allocation4], 1
    %528 = vsyncpa %s527, 1
    %529 = vsyncpa [#allocation9], 1
    %s530 = scalar_lea.sflag [#allocation9], 1
    %531 = vsyncpa %s530, 1

</llo_original>
